<compile_context>
chip_gen: v5e
topology: v5e:2x2
jax: 0.10.0
libtpu: 0.0.40
codegen_flags: <defaults>
</compile_context>

<pallas_src>
import numpy as np
import jax
import jax.numpy as jnp
from jax.experimental import pallas as pl
from jax.experimental.pallas import tpu as pltpu


# --------------------------------------------------------------------------
# copy="dma": direct HBM->HBM DMA (no VMEM staging, no (8,128) constraints).
# --------------------------------------------------------------------------
def _make_dma_copy_kernel(chunk_rows):
    def kernel(x_hbm, o_hbm, sem):
        i = pl.program_id(0)
        src = x_hbm.at[pl.ds(i * chunk_rows, chunk_rows)]
        dst = o_hbm.at[pl.ds(i * chunk_rows, chunk_rows)]
        cp = pltpu.make_async_copy(src, dst, sem)
        cp.start()
        cp.wait()
    return kernel


def _copy_dma(x):
    """Materializing copy of `x` (any shape/dtype) via HBM->HBM DMA."""
    total = int(np.prod(x.shape)) if x.ndim > 0 else 1
    itemsize = jnp.dtype(x.dtype).itemsize

    # Flatten to a (rows, cols) slab purely for chunking; the DMA engine has
    # no lane/sublane alignment requirements.
    cols = total
    for cand in (2048, 1024, 512, 256, 128):
        if total % cand == 0:
            cols = cand
            break
    rows = total // cols
    slab = x.reshape(rows, cols)

    # ~64 MiB chunks: large enough that per-step overhead vanishes, while
    # multi-hundred-MiB tensors still get >=2 chunks so the "parallel" grid
    # axis can be sharded across v7x's two TensorCores.
    target_chunk_bytes = 64 * 1024 * 1024
    row_bytes = max(cols * itemsize, 1)
    max_chunk_rows = max(1, min(rows, target_chunk_bytes // row_bytes))
    chunk_rows = 1
    d = max_chunk_rows
    while d >= 1:
        if rows % d == 0:
            chunk_rows = d
            break
        d -= 1
    num_chunks = rows // chunk_rows

    return pl.pallas_call(
        _make_dma_copy_kernel(chunk_rows),
        out_shape=jax.ShapeDtypeStruct((rows, cols), x.dtype),
        grid=(num_chunks,),
        in_specs=[pl.BlockSpec(memory_space=pl.ANY)],
        out_specs=pl.BlockSpec(memory_space=pl.ANY),
        scratch_shapes=[pltpu.SemaphoreType.DMA],
        compiler_params=pltpu.CompilerParams(
            dimension_semantics=("parallel",),
        ),
    )(slab)


# --------------------------------------------------------------------------
# copy="vmem": pipelined VMEM identity copy (reference / comparison path).
# --------------------------------------------------------------------------
def _vmem_copy_kernel(x_ref, o_ref):
    o_ref[...] = x_ref[...]


def _copy_vmem(x):
    """Tiled, pipelined VMEM copy.  Returns None if a (packed-sublane, 128)-
    aligned slab layout cannot be found; caller falls back to the DMA path."""
    total = int(np.prod(x.shape)) if x.ndim > 0 else 1
    itemsize = jnp.dtype(x.dtype).itemsize
    sub = max(8, 32 // itemsize)          # packed sublanes: 8 f32, 16 bf16, 32 int8

    lanes = None
    for cand in (1024, 512, 256, 128):    # prefer wide lanes -> unmasked vst
        if total % cand == 0 and (total // cand) % sub == 0:
            lanes = cand
            break
    if lanes is None:
        return None
    rows = total // lanes
    slab = x.reshape(rows, lanes)

    # Largest row tile that (a) is a multiple of the packed sublane count,
    # (b) divides rows exactly, (c) keeps tile bytes <= ~4 MiB.
    max_tile_bytes = 4 * 1024 * 1024
    max_tr = max(sub, min(rows, max_tile_bytes // (lanes * itemsize)))
    tr = sub
    d = (max_tr // sub) * sub
    while d >= sub:
        if rows % d == 0:
            tr = d
            break
        d -= sub

    return pl.pallas_call(
        _vmem_copy_kernel,
        out_shape=jax.ShapeDtypeStruct((rows, lanes), x.dtype),
        grid=(rows // tr,),
        in_specs=[pl.BlockSpec((tr, lanes), lambda i: (i, 0))],
        out_specs=pl.BlockSpec((tr, lanes), lambda i: (i, 0)),
        compiler_params=pltpu.CompilerParams(
            dimension_semantics=("parallel",),
            vmem_limit_bytes=32 * 1024 * 1024,
        ),
    )(slab)


# --------------------------------------------------------------------------
# Public wrapper: equivalent of torch.Tensor.squeeze()
# --------------------------------------------------------------------------
def squeeze_pallas(x: jax.Array, copy: str | None = "dma") -> jax.Array:
    """Drop all size-1 dims (torch .squeeze()).

    copy=None    -> metadata-only reshape (recommended; matches torch's view).
    copy="dma"   -> materializing copy via direct HBM->HBM DMA.
    copy="vmem"  -> materializing copy via a tiled, pipelined VMEM kernel.
    """
    squeezed_shape = tuple(int(d) for d in x.shape if d != 1)
    total = int(np.prod(x.shape)) if x.ndim > 0 else 1

    if copy is None or total == 0:
        return x.reshape(squeezed_shape)

    y = None
    if copy == "vmem":
        y = _copy_vmem(x)
    if y is None:                 # copy == "dma", or vmem layout did not fit
        y = _copy_dma(x)
    return y.reshape(squeezed_shape)


if __name__ == "__main__":
    key = jax.random.PRNGKey(0)

    # NCHW-like input with a size-1 channel dim: (4, 1, 16, 16) -> (4, 16, 16)
    x = jax.random.normal(key, (4, 1, 16, 16), dtype=jnp.float32)
    ref = jnp.squeeze(x)

    out_dma = squeeze_pallas(x, copy="dma")
    jax.block_until_ready(out_dma)
    out_vmem = squeeze_pallas(x, copy="vmem")
    jax.block_until_ready(out_vmem)
    out_view = squeeze_pallas(x, copy=None)
    jax.block_until_ready(out_view)

    for out in (out_dma, out_vmem, out_view):
        assert out.shape == ref.shape, (out.shape, ref.shape)
        assert out.dtype == ref.dtype
        np.testing.assert_array_equal(np.asarray(out), np.asarray(ref))

    # Sub-32-bit dtype to exercise the dtype-aware (packed-sublane) tiling.
    x_bf16 = jax.random.normal(jax.random.PRNGKey(1), (2, 1, 16, 1, 128),
                               dtype=jnp.bfloat16)
    ref_bf16 = jnp.squeeze(x_bf16)
    out_bf16_vmem = squeeze_pallas(x_bf16, copy="vmem")
    jax.block_until_ready(out_bf16_vmem)
    np.testing.assert_array_equal(np.asarray(out_bf16_vmem), np.asarray(ref_bf16))
    out_bf16_dma = squeeze_pallas(x_bf16, copy="dma")
    jax.block_until_ready(out_bf16_dma)
    np.testing.assert_array_equal(np.asarray(out_bf16_dma), np.asarray(ref_bf16))

    print("KERNEL_OK")
</pallas_src>

<mosaic_0001>
module attributes {stable_mosaic.version = 11 : i64} {
  func.func @kernel(%arg0: i32, %arg1: memref<1x1024xf32, #tpu.memory_space<any>>, %arg2: memref<1x1024xf32, #tpu.memory_space<any>>, %arg3: memref<!tpu.dma_semaphore, #tpu.memory_space<semaphore_mem>>) attributes {dimension_semantics = [#tpu.dimension_semantics<parallel>], iteration_bounds = array<i64: 1>, scalar_prefetch = 0 : i64, scratch_operands = 1 : i64, tpu.core_type = #tpu.core_type<tc>, window_params = [{}, {}]} {
    %c1_i32 = arith.constant 1 : i32
    %0 = arith.muli %arg0, %c1_i32 : i32
    %c1_i32_0 = arith.constant 1 : i32
    %1 = arith.muli %arg0, %c1_i32_0 : i32
    %c0_i32 = arith.constant 0 : i32
    %2 = tpu.memref_slice %arg1[%0, %c0_i32] : memref<1x1024xf32, #tpu.memory_space<any>> -> memref<1x1024xf32, #tpu.memory_space<any>>
    %c0_i32_1 = arith.constant 0 : i32
    %3 = tpu.memref_slice %arg2[%1, %c0_i32_1] : memref<1x1024xf32, #tpu.memory_space<any>> -> memref<1x1024xf32, #tpu.memory_space<any>>
    tpu.enqueue_dma source(%2 : memref<1x1024xf32, #tpu.memory_space<any>>) target(%3 : memref<1x1024xf32, #tpu.memory_space<any>>) target_semaphore(%arg3 : memref<!tpu.dma_semaphore, #tpu.memory_space<semaphore_mem>>)
    %c0_i32_2 = arith.constant 0 : i32
    %4 = tpu.memref_slice %arg1[%0, %c0_i32_2] : memref<1x1024xf32, #tpu.memory_space<any>> -> memref<1x1024xf32, #tpu.memory_space<any>>
    %c0_i32_3 = arith.constant 0 : i32
    %5 = tpu.memref_slice %arg2[%1, %c0_i32_3] : memref<1x1024xf32, #tpu.memory_space<any>> -> memref<1x1024xf32, #tpu.memory_space<any>>
    tpu.wait_dma2 semaphore(%arg3 : memref<!tpu.dma_semaphore, #tpu.memory_space<semaphore_mem>>) src(%4 : memref<1x1024xf32, #tpu.memory_space<any>>) dst(%5 : memref<1x1024xf32, #tpu.memory_space<any>>)
    return
  }
}

</mosaic_0001>

<llo_original>
// kernel: tpu_custom_call.1
$region0: #{tpu_custom_call.1}
  #allocation0 [shape = 'u32[]', space=smem, size = 0x4, offset = 0x4, fixed_abs, tag = 'smem constant byte address 0x4 - core index']
  #allocation1 [shape = 'u32[72,128]{1,0:T(1,128)}', space=vmem, size = 0x9000, scoped, tag = 'internal scratch']
  #allocation2 [shape = 's32[1]{0}', space=sflag, size = 0x4, scoped, tag = 'scratch operand']
  #allocation3 [shape = 's32[]', space=sflag, size = 0x4, offset = 0, fixed_abs, tag = 'sflag constant byte address 0x0 - dummy sync flag']
  #allocation4 [shape = 'u32[0]{0}', space=smem, size = 0, offset = 0, fixed_abs, tag = 'smem constant byte address 0x0 - null']
  %s0 = inlined_call_operand.hbm [shape: f32[1,1024], index: 0, kind: input, shape index: {}]
  %s1 = inlined_call_operand.hbm [shape: f32[1,1024], index: 1, kind: output, shape index: {}]
  %s2 = sld [smem:[#allocation0]]
  $region2: #{tpu_custom_call.1} parent=0
    _
  %s4 = ssub.s32 1, %s2
  %s5 = scalar_select 0, %s4, %s2
  %s6 = smul.u32 0, 8
  %s7 = scalar_lea.hbm %s0, %s6
  %s8 = scalar_lea.hbm %s1, %s6
  %s10 = sshll.u32 1, 14
  %s11 = sxor.u32 4294967295, %s10
  %s13 = sshll.u32 %s7, 4
  %s14 = int_to_ptr.hbm [resolvable:$true] %s13
  %s15 = sshll.u32 %s8, 4
  %s16 = int_to_ptr.hbm [resolvable:$true] %s15
  %19 = dma.general %s14, 128, %s16, [#allocation2], [#allocation3], [#allocation4], 0, 0
  %s20 = smul.u32 1, 8
  %s21 = sshll.u32 %s20, 4
  %22 = dma.done [#allocation2], %s21
  %23 = vsyncmov [#allocation2]
  %s24 = vpop.sfrf %23
  %p25 = scmp.eq.s32.totalorder %s24, 0
  %p26 = pneg %p25
  %28 = shalt.err (%p26)

</llo_original>
